<compile_context>
chip_gen: v5e
topology: v5e:2x2
jax: 0.10.0
libtpu: 0.0.40
codegen_flags: <defaults>
</compile_context>

<pallas_src>
import functools

import jax
import jax.numpy as jnp
from jax.experimental import pallas as pl
from jax.experimental.pallas import tpu as pltpu


DIVERSITY_WEIGHT = 0.1


def _flexible_loss_kernel(y1_ref, y2_ref, yh1_ref, yh2_ref, out_ref, acc_ref, *,
                          inv_n, diversity_weight, n_valid, tile_rows,
                          lane_width, mask_last):
    """Streaming 5-term |diff| reduction; finalizes the scalar loss on the last step.

    acc_ref: VMEM (8, L) f32 — lane-wise running partial sums, rows:
      0: sum|yh1 - y1|   1: sum|yh2 - y2|   2: sum|yh1 - y2|   3: sum|yh2 - y1|
      4: sum||yh1 - yh2| - |y1 - y2||       5..7: unused
    out_ref: SMEM (1,) f32 — final scalar loss, written on the last step.
    """
    step = pl.program_id(0)
    last = pl.num_programs(0) - 1

    @pl.when(step == 0)
    def _init():
        acc_ref[...] = jnp.zeros_like(acc_ref)

    # Native-dtype tiles; upcast on the VPU, accumulate in f32.
    y1 = y1_ref[...].astype(jnp.float32)
    y2 = y2_ref[...].astype(jnp.float32)
    yh1 = yh1_ref[...].astype(jnp.float32)
    yh2 = yh2_ref[...].astype(jnp.float32)

    # Reuse differences algebraically:
    #   yh1 - yh2 == a - d ; y1 - y2 == b - d (sign dropped by abs).
    a = yh1 - y1          # '1_to_1' residual
    b = yh2 - y2          # '2_to_2' residual
    c = yh1 - y2          # '1_to_2' residual
    d = yh2 - y1          # '2_to_1' residual

    def _accumulate(masked):
        t11 = jnp.abs(a)
        t22 = jnp.abs(b)
        t12 = jnp.abs(c)
        t21 = jnp.abs(d)
        tdv = jnp.abs(jnp.abs(a - d) - jnp.abs(b - d))
        if masked:
            # Element-granular mask for the ragged tail, applied AFTER the
            # elementwise math so any OOB garbage is discarded by the select.
            row = jax.lax.broadcasted_iota(jnp.int32, a.shape, 0)
            lane = jax.lax.broadcasted_iota(jnp.int32, a.shape, 1)
            flat = (step * tile_rows + row) * lane_width + lane
            valid = flat < n_valid
            zero = jnp.float32(0.0)
            t11 = jnp.where(valid, t11, zero)
            t22 = jnp.where(valid, t22, zero)
            t12 = jnp.where(valid, t12, zero)
            t21 = jnp.where(valid, t21, zero)
            tdv = jnp.where(valid, tdv, zero)
        # Sublane reduce only (VPU adds); the cross-lane reduce is deferred to
        # the finalize step so per-step work stays off the XLU.
        acc_ref[pl.ds(0, 1), :] += jnp.sum(t11, axis=0, keepdims=True)
        acc_ref[pl.ds(1, 1), :] += jnp.sum(t22, axis=0, keepdims=True)
        acc_ref[pl.ds(2, 1), :] += jnp.sum(t12, axis=0, keepdims=True)
        acc_ref[pl.ds(3, 1), :] += jnp.sum(t21, axis=0, keepdims=True)
        acc_ref[pl.ds(4, 1), :] += jnp.sum(tdv, axis=0, keepdims=True)

    if mask_last:
        @pl.when(step < last)
        def _unmasked():
            _accumulate(False)

        @pl.when(step == last)
        def _masked():
            _accumulate(True)
    else:
        _accumulate(False)

    @pl.when(step == last)
    def _finalize():
        inv = jnp.float32(inv_n)                       # GLOBAL 1/N, applied once
        l11 = jnp.sum(acc_ref[pl.ds(0, 1), :]) * inv
        l22 = jnp.sum(acc_ref[pl.ds(1, 1), :]) * inv
        l12 = jnp.sum(acc_ref[pl.ds(2, 1), :]) * inv
        l21 = jnp.sum(acc_ref[pl.ds(3, 1), :]) * inv
        dl = jnp.sum(acc_ref[pl.ds(4, 1), :]) * inv
        straight = l11 + l22
        cross = l12 + l21
        # PyTorch `min(loss_dict, key=...)` with insertion order
        # ['1_to_1','2_to_2','1_to_2','2_to_1'] (first-minimum tie-break):
        # on a tie across groups the first minimum is index 0 or 1, i.e. the
        # "straight" pair, which `<=` reproduces exactly.
        pair = jnp.where(jnp.minimum(l11, l22) <= jnp.minimum(l12, l21),
                         straight, cross)
        out_ref[0] = pair + jnp.float32(diversity_weight) * dl


def _vmem_capacity_bytes():
    try:
        info = pltpu.get_tpu_info()
        cap = getattr(info, "vmem_capacity_bytes", None)
        if cap:
            return int(cap)
    except Exception:
        pass
    return 64 << 20                 # assume the smallest generation (v7x)


def _budgets():
    cap = _vmem_capacity_bytes()
    if cap >= (96 << 20):           # v5e / v6e class: 128 MiB physical VMEM
        tile_budget = 3 << 20       # per-input tile; 4 inputs x 2 buffers = 24 MiB
        vmem_limit = 32 << 20       # above v5e's 16 MiB default scoped limit
    else:                           # v7x class: 64 MiB physical VMEM
        tile_budget = 3 << 19       # 1.5 MiB per tile; 12 MiB total
        vmem_limit = 24 << 20
    return tile_budget, vmem_limit


def _choose_lane_width(n_elems):
    # Prefer the widest lane-dense view that divides N so no pad copy is needed.
    for lane_width in (512, 256, 128):
        if n_elems % lane_width == 0:
            return lane_width
    return 512                      # ragged: small zero pad (<512 elems) + mask


def _choose_tile_rows(n_rows, lane_width, itemsize, tile_budget_bytes):
    bytes_per_row = lane_width * itemsize
    total_bytes = n_rows * bytes_per_row
    if total_bytes <= (1 << 20) or n_rows <= 32:
        return n_rows               # small: whole problem = one resident block
    # Mid/large inputs: at least ~8 pipelined grid steps, capped by the
    # generation-aware per-tile VMEM budget; rows are a multiple of 32
    # (sublane packing for f32 / bf16 / int8).
    rows_budget = max(32, (tile_budget_bytes // bytes_per_row) // 32 * 32)
    rows_pipeline = max(32, (n_rows // 8) // 32 * 32)
    return min(rows_budget, rows_pipeline, n_rows)


def flexible_loss(y1, y2, y_hat1, y_hat2, diversity_weight=DIVERSITY_WEIGHT,
                  lane_width=None, tile_rows=None):
    assert y1.shape == y2.shape == y_hat1.shape == y_hat2.shape
    assert y1.dtype == y2.dtype == y_hat1.dtype == y_hat2.dtype

    # L1Loss means over ALL elements, so any flattened view is equivalent.
    flats = [jnp.reshape(x, (-1,)) for x in (y1, y2, y_hat1, y_hat2)]
    n = int(flats[0].shape[0])
    if n == 0:
        return jnp.float32(float("nan"))        # mirror PyTorch L1Loss on empty

    if lane_width is None:
        lw = _choose_lane_width(n)
    else:
        lw = int(lane_width)
        assert lw > 0 and lw % 128 == 0

    n_rows = pl.cdiv(n, lw)
    padded_n = n_rows * lw
    if padded_n != n:
        # Zero-pad so the lane-dense 2-D view exists.  Padded zeros contribute
        # |0-0| = 0 and the last-step mask also discards them / OOB rows.
        flats = [jnp.pad(f, (0, padded_n - n)) for f in flats]
    mats = [jnp.reshape(f, (n_rows, lw)) for f in flats]

    itemsize = jnp.dtype(y1.dtype).itemsize
    tile_budget, vmem_limit = _budgets()
    if tile_rows is None:
        tr = _choose_tile_rows(n_rows, lw, itemsize, tile_budget)
    else:
        tr = int(tile_rows)
        if tr >= n_rows or n_rows < 8:
            tr = n_rows
        else:
            tr = max(8, (tr // 8) * 8)          # (8, 128) block constraint

    grid = pl.cdiv(n_rows, tr)
    mask_last = (n_rows % tr != 0) or (padded_n != n)
    inv_n = 1.0 / float(n)

    kernel = functools.partial(
        _flexible_loss_kernel,
        inv_n=inv_n,
        diversity_weight=float(diversity_weight),
        n_valid=n,
        tile_rows=tr,
        lane_width=lw,
        mask_last=mask_last,
    )

    in_spec = pl.BlockSpec((tr, lw), lambda i: (i, 0))

    out = pl.pallas_call(
        kernel,
        out_shape=jax.ShapeDtypeStruct((1,), jnp.float32),
        grid=(grid,),
        in_specs=[in_spec, in_spec, in_spec, in_spec],
        out_specs=pl.BlockSpec(memory_space=pltpu.MemorySpace.SMEM),
        scratch_shapes=[pltpu.VMEM((8, lw), jnp.float32)],
        compiler_params=pltpu.CompilerParams(
            dimension_semantics=("arbitrary",),          # serial reduction axis
            vmem_limit_bytes=vmem_limit),
    )(*mats)
    return out[0]


def _reference(y1, y2, y_hat1, y_hat2, diversity_weight=DIVERSITY_WEIGHT):
    l11 = jnp.mean(jnp.abs(y_hat1 - y1))
    l22 = jnp.mean(jnp.abs(y_hat2 - y2))
    l12 = jnp.mean(jnp.abs(y_hat1 - y2))
    l21 = jnp.mean(jnp.abs(y_hat2 - y1))
    pair = jnp.where(jnp.minimum(l11, l22) <= jnp.minimum(l12, l21),
                     l11 + l22, l12 + l21)
    diff = jnp.mean(jnp.abs(jnp.abs(y_hat1 - y_hat2) - jnp.abs(y1 - y2)))
    return pair + diversity_weight * diff


if __name__ == "__main__":
    key = jax.random.PRNGKey(0)
    k1, k2, k3, k4 = jax.random.split(key, 4)

    # Small regression-style shapes; N = 40*32 = 1280 elements.
    B, D = 40, 32
    y1 = jax.random.normal(k1, (B, D), dtype=jnp.float32)
    y2 = jax.random.normal(k2, (B, D), dtype=jnp.float32)
    y_hat1 = jax.random.normal(k3, (B, D), dtype=jnp.float32)
    y_hat2 = jax.random.normal(k4, (B, D), dtype=jnp.float32)

    ref = jax.block_until_ready(_reference(y1, y2, y_hat1, y_hat2))

    # 1) Auto config: lane-dense (5, 256) view, single resident block, grid=1.
    total = jax.block_until_ready(flexible_loss(y1, y2, y_hat1, y_hat2))
    assert jnp.allclose(total, ref, rtol=1e-5, atol=1e-6), (total, ref)

    # 2) Forced multi-step grid with a ragged last tile: (10, 128) view tiled
    #    as (8, 128) blocks -> grid=2, last-step element mask exercised.
    total_tiled = jax.block_until_ready(
        flexible_loss(y1, y2, y_hat1, y_hat2, lane_width=128, tile_rows=8))
    assert jnp.allclose(total_tiled, ref, rtol=1e-5, atol=1e-6), (total_tiled, ref)

    # 3) Native-bf16 ingestion: inputs stay bf16 in HBM, upcast + f32
    #    accumulation happen inside the kernel.
    y1b, y2b, yh1b, yh2b = (x.astype(jnp.bfloat16) for x in (y1, y2, y_hat1, y_hat2))
    ref_bf16 = jax.block_until_ready(_reference(
        y1b.astype(jnp.float32), y2b.astype(jnp.float32),
        yh1b.astype(jnp.float32), yh2b.astype(jnp.float32)))
    total_bf16 = jax.block_until_ready(flexible_loss(y1b, y2b, yh1b, yh2b))
    assert jnp.allclose(total_bf16, ref_bf16, rtol=1e-4, atol=1e-5), (total_bf16, ref_bf16)

    print("KERNEL_OK")
</pallas_src>

<mosaic_0001>
module attributes {stable_mosaic.version = 11 : i64} {
  func.func @_flexible_loss_kernel(%arg0: i32, %arg1: memref<5x256xf32, #tpu.memory_space<vmem>>, %arg2: memref<5x256xf32, #tpu.memory_space<vmem>>, %arg3: memref<5x256xf32, #tpu.memory_space<vmem>>, %arg4: memref<5x256xf32, #tpu.memory_space<vmem>>, %arg5: memref<1xf32, #tpu.memory_space<smem>>, %arg6: memref<8x256xf32, #tpu.memory_space<vmem>>) attributes {dimension_semantics = [#tpu.dimension_semantics<arbitrary>], iteration_bounds = array<i64: 1>, scalar_prefetch = 0 : i64, scratch_operands = 1 : i64, tpu.core_type = #tpu.core_type<tc>, window_params = [{transform_indices = @transform_0, window_bounds = array<i64: 5, 256>}, {transform_indices = @transform_1, window_bounds = array<i64: 5, 256>}, {transform_indices = @transform_2, window_bounds = array<i64: 5, 256>}, {transform_indices = @transform_3, window_bounds = array<i64: 5, 256>}, {transform_indices = @transform_4, window_bounds = array<i64: 1>}]} {
    %c0_i32 = arith.constant 0 : i32
    %0 = arith.cmpi eq, %arg0, %c0_i32 : i32
    %1 = arith.extui %0 : i1 to i32
    %c0_i32_0 = arith.constant 0 : i32
    %2 = arith.cmpi ne, %1, %c0_i32_0 : i32
    scf.if %2 {
      %cst_30 = arith.constant 0.000000e+00 : f32
      %49 = vector.broadcast %cst_30 : f32 to vector<8x256xf32>
      %c0_31 = arith.constant 0 : index
      %c0_32 = arith.constant 0 : index
      %50 = vector.load %arg6[%c0_31, %c0_32] : memref<8x256xf32, #tpu.memory_space<vmem>>, vector<8x256xf32>
      tpu.vector_store %arg6[%c0_31, %c0_32], %49 {strides = array<i32>} : memref<8x256xf32, #tpu.memory_space<vmem>>, vector<8x256xf32>,
    } else {
    }
    %c0 = arith.constant 0 : index
    %c0_1 = arith.constant 0 : index
    %3 = vector.load %arg1[%c0, %c0_1] : memref<5x256xf32, #tpu.memory_space<vmem>>, vector<5x256xf32>
    %c0_2 = arith.constant 0 : index
    %c0_3 = arith.constant 0 : index
    %4 = vector.load %arg2[%c0_2, %c0_3] : memref<5x256xf32, #tpu.memory_space<vmem>>, vector<5x256xf32>
    %c0_4 = arith.constant 0 : index
    %c0_5 = arith.constant 0 : index
    %5 = vector.load %arg3[%c0_4, %c0_5] : memref<5x256xf32, #tpu.memory_space<vmem>>, vector<5x256xf32>
    %c0_6 = arith.constant 0 : index
    %c0_7 = arith.constant 0 : index
    %6 = vector.load %arg4[%c0_6, %c0_7] : memref<5x256xf32, #tpu.memory_space<vmem>>, vector<5x256xf32>
    %7 = arith.subf %5, %3 : vector<5x256xf32>
    %8 = arith.subf %6, %4 : vector<5x256xf32>
    %9 = arith.subf %5, %4 : vector<5x256xf32>
    %10 = arith.subf %6, %3 : vector<5x256xf32>
    %11 = math.absf %7 : vector<5x256xf32>
    %12 = math.absf %8 : vector<5x256xf32>
    %13 = math.absf %9 : vector<5x256xf32>
    %14 = math.absf %10 : vector<5x256xf32>
    %15 = arith.subf %7, %10 : vector<5x256xf32>
    %16 = math.absf %15 : vector<5x256xf32>
    %17 = arith.subf %8, %10 : vector<5x256xf32>
    %18 = math.absf %17 : vector<5x256xf32>
    %19 = arith.subf %16, %18 : vector<5x256xf32>
    %20 = math.absf %19 : vector<5x256xf32>
    %c0_8 = arith.constant 0 : index
    %c0_9 = arith.constant 0 : index
    %21 = vector.load %arg6[%c0_8, %c0_9] : memref<8x256xf32, #tpu.memory_space<vmem>>, vector<1x256xf32>
    %cst = arith.constant dense<0.000000e+00> : vector<256xf32>
    %22 = vector.multi_reduction <add>, %11, %cst [0] : vector<5x256xf32> to vector<256xf32>
    %23 = vector.shape_cast %22 : vector<256xf32> to vector<1x256xf32>
    %24 = arith.addf %21, %23 : vector<1x256xf32>
    %c0_10 = arith.constant 0 : index
    %c0_11 = arith.constant 0 : index
    %25 = vector.load %arg6[%c0_10, %c0_11] : memref<8x256xf32, #tpu.memory_space<vmem>>, vector<1x256xf32>
    tpu.vector_store %arg6[%c0_10, %c0_11], %24 {strides = array<i32>} : memref<8x256xf32, #tpu.memory_space<vmem>>, vector<1x256xf32>,
    %c1 = arith.constant 1 : index
    %c0_12 = arith.constant 0 : index
    %26 = vector.load %arg6[%c1, %c0_12] : memref<8x256xf32, #tpu.memory_space<vmem>>, vector<1x256xf32>
    %cst_13 = arith.constant dense<0.000000e+00> : vector<256xf32>
    %27 = vector.multi_reduction <add>, %12, %cst_13 [0] : vector<5x256xf32> to vector<256xf32>
    %28 = vector.shape_cast %27 : vector<256xf32> to vector<1x256xf32>
    %29 = arith.addf %26, %28 : vector<1x256xf32>
    %c1_14 = arith.constant 1 : index
    %c0_15 = arith.constant 0 : index
    %30 = vector.load %arg6[%c1_14, %c0_15] : memref<8x256xf32, #tpu.memory_space<vmem>>, vector<1x256xf32>
    tpu.vector_store %arg6[%c1_14, %c0_15], %29 {strides = array<i32>} : memref<8x256xf32, #tpu.memory_space<vmem>>, vector<1x256xf32>,
    %c2 = arith.constant 2 : index
    %c0_16 = arith.constant 0 : index
    %31 = vector.load %arg6[%c2, %c0_16] : memref<8x256xf32, #tpu.memory_space<vmem>>, vector<1x256xf32>
    %cst_17 = arith.constant dense<0.000000e+00> : vector<256xf32>
    %32 = vector.multi_reduction <add>, %13, %cst_17 [0] : vector<5x256xf32> to vector<256xf32>
    %33 = vector.shape_cast %32 : vector<256xf32> to vector<1x256xf32>
    %34 = arith.addf %31, %33 : vector<1x256xf32>
    %c2_18 = arith.constant 2 : index
    %c0_19 = arith.constant 0 : index
    %35 = vector.load %arg6[%c2_18, %c0_19] : memref<8x256xf32, #tpu.memory_space<vmem>>, vector<1x256xf32>
    tpu.vector_store %arg6[%c2_18, %c0_19], %34 {strides = array<i32>} : memref<8x256xf32, #tpu.memory_space<vmem>>, vector<1x256xf32>,
    %c3 = arith.constant 3 : index
    %c0_20 = arith.constant 0 : index
    %36 = vector.load %arg6[%c3, %c0_20] : memref<8x256xf32, #tpu.memory_space<vmem>>, vector<1x256xf32>
    %cst_21 = arith.constant dense<0.000000e+00> : vector<256xf32>
    %37 = vector.multi_reduction <add>, %14, %cst_21 [0] : vector<5x256xf32> to vector<256xf32>
    %38 = vector.shape_cast %37 : vector<256xf32> to vector<1x256xf32>
    %39 = arith.addf %36, %38 : vector<1x256xf32>
    %c3_22 = arith.constant 3 : index
    %c0_23 = arith.constant 0 : index
    %40 = vector.load %arg6[%c3_22, %c0_23] : memref<8x256xf32, #tpu.memory_space<vmem>>, vector<1x256xf32>
    tpu.vector_store %arg6[%c3_22, %c0_23], %39 {strides = array<i32>} : memref<8x256xf32, #tpu.memory_space<vmem>>, vector<1x256xf32>,
    %c4 = arith.constant 4 : index
    %c0_24 = arith.constant 0 : index
    %41 = vector.load %arg6[%c4, %c0_24] : memref<8x256xf32, #tpu.memory_space<vmem>>, vector<1x256xf32>
    %cst_25 = arith.constant dense<0.000000e+00> : vector<256xf32>
    %42 = vector.multi_reduction <add>, %20, %cst_25 [0] : vector<5x256xf32> to vector<256xf32>
    %43 = vector.shape_cast %42 : vector<256xf32> to vector<1x256xf32>
    %44 = arith.addf %41, %43 : vector<1x256xf32>
    %c4_26 = arith.constant 4 : index
    %c0_27 = arith.constant 0 : index
    %45 = vector.load %arg6[%c4_26, %c0_27] : memref<8x256xf32, #tpu.memory_space<vmem>>, vector<1x256xf32>
    tpu.vector_store %arg6[%c4_26, %c0_27], %44 {strides = array<i32>} : memref<8x256xf32, #tpu.memory_space<vmem>>, vector<1x256xf32>,
    %c0_i32_28 = arith.constant 0 : i32
    %46 = arith.cmpi eq, %arg0, %c0_i32_28 : i32
    %47 = arith.extui %46 : i1 to i32
    %c0_i32_29 = arith.constant 0 : i32
    %48 = arith.cmpi ne, %47, %c0_i32_29 : i32
    scf.if %48 {
      %c0_30 = arith.constant 0 : index
      %c0_31 = arith.constant 0 : index
      %49 = vector.load %arg6[%c0_30, %c0_31] : memref<8x256xf32, #tpu.memory_space<vmem>>, vector<1x256xf32>
      %50 = vector.shape_cast %49 : vector<1x256xf32> to vector<1x1x256xf32>
      %cst_32 = arith.constant dense<0.000000e+00> : vector<1xf32>
      %51 = vector.multi_reduction <add>, %50, %cst_32 [1, 2] : vector<1x1x256xf32> to vector<1xf32>
      %52 = vector.shape_cast %51 : vector<1xf32> to vector<1x1x1xf32>
      %53 = vector.extract %52[0, 0, 0] : f32 from vector<1x1x1xf32>
      %cst_33 = arith.constant 7.812500e-04 : f32
      %54 = arith.mulf %53, %cst_33 : f32
      %c1_34 = arith.constant 1 : index
      %c0_35 = arith.constant 0 : index
      %55 = vector.load %arg6[%c1_34, %c0_35] : memref<8x256xf32, #tpu.memory_space<vmem>>, vector<1x256xf32>
      %56 = vector.shape_cast %55 : vector<1x256xf32> to vector<1x1x256xf32>
      %cst_36 = arith.constant dense<0.000000e+00> : vector<1xf32>
      %57 = vector.multi_reduction <add>, %56, %cst_36 [1, 2] : vector<1x1x256xf32> to vector<1xf32>
      %58 = vector.shape_cast %57 : vector<1xf32> to vector<1x1x1xf32>
      %59 = vector.extract %58[0, 0, 0] : f32 from vector<1x1x1xf32>
      %cst_37 = arith.constant 7.812500e-04 : f32
      %60 = arith.mulf %59, %cst_37 : f32
      %c2_38 = arith.constant 2 : index
      %c0_39 = arith.constant 0 : index
      %61 = vector.load %arg6[%c2_38, %c0_39] : memref<8x256xf32, #tpu.memory_space<vmem>>, vector<1x256xf32>
      %62 = vector.shape_cast %61 : vector<1x256xf32> to vector<1x1x256xf32>
      %cst_40 = arith.constant dense<0.000000e+00> : vector<1xf32>
      %63 = vector.multi_reduction <add>, %62, %cst_40 [1, 2] : vector<1x1x256xf32> to vector<1xf32>
      %64 = vector.shape_cast %63 : vector<1xf32> to vector<1x1x1xf32>
      %65 = vector.extract %64[0, 0, 0] : f32 from vector<1x1x1xf32>
      %cst_41 = arith.constant 7.812500e-04 : f32
      %66 = arith.mulf %65, %cst_41 : f32
      %c3_42 = arith.constant 3 : index
      %c0_43 = arith.constant 0 : index
      %67 = vector.load %arg6[%c3_42, %c0_43] : memref<8x256xf32, #tpu.memory_space<vmem>>, vector<1x256xf32>
      %68 = vector.shape_cast %67 : vector<1x256xf32> to vector<1x1x256xf32>
      %cst_44 = arith.constant dense<0.000000e+00> : vector<1xf32>
      %69 = vector.multi_reduction <add>, %68, %cst_44 [1, 2] : vector<1x1x256xf32> to vector<1xf32>
      %70 = vector.shape_cast %69 : vector<1xf32> to vector<1x1x1xf32>
      %71 = vector.extract %70[0, 0, 0] : f32 from vector<1x1x1xf32>
      %cst_45 = arith.constant 7.812500e-04 : f32
      %72 = arith.mulf %71, %cst_45 : f32
      %c4_46 = arith.constant 4 : index
      %c0_47 = arith.constant 0 : index
      %73 = vector.load %arg6[%c4_46, %c0_47] : memref<8x256xf32, #tpu.memory_space<vmem>>, vector<1x256xf32>
      %74 = vector.shape_cast %73 : vector<1x256xf32> to vector<1x1x256xf32>
      %cst_48 = arith.constant dense<0.000000e+00> : vector<1xf32>
      %75 = vector.multi_reduction <add>, %74, %cst_48 [1, 2] : vector<1x1x256xf32> to vector<1xf32>
      %76 = vector.shape_cast %75 : vector<1xf32> to vector<1x1x1xf32>
      %77 = vector.extract %76[0, 0, 0] : f32 from vector<1x1x1xf32>
      %cst_49 = arith.constant 7.812500e-04 : f32
      %78 = arith.mulf %77, %cst_49 : f32
      %79 = arith.addf %54, %60 : f32
      %80 = arith.addf %66, %72 : f32
      %81 = arith.minimumf %54, %60 : f32
      %82 = arith.minimumf %66, %72 : f32
      %83 = arith.cmpf ole, %81, %82 : f32
      %84 = arith.select %83, %79, %80 : f32
      %cst_50 = arith.constant 1.000000e-01 : f32
      %85 = arith.mulf %cst_50, %78 : f32
      %86 = arith.addf %84, %85 : f32
      %c0_51 = arith.constant 0 : index
      %87 = memref.load %arg5[%c0_51] : memref<1xf32, #tpu.memory_space<smem>>
      memref.store %86, %arg5[%c0_51] : memref<1xf32, #tpu.memory_space<smem>>
    } else {
    }
    return
  }
  func.func @transform_0(%arg0: i32) -> (i32, i32) {
    %c0_i32 = arith.constant 0 : i32
    %c0_i32_0 = arith.constant 0 : i32
    return %arg0, %c0_i32 : i32, i32
  }
  func.func @transform_1(%arg0: i32) -> (i32, i32) {
    %c0_i32 = arith.constant 0 : i32
    %c0_i32_0 = arith.constant 0 : i32
    return %arg0, %c0_i32 : i32, i32
  }
  func.func @transform_2(%arg0: i32) -> (i32, i32) {
    %c0_i32 = arith.constant 0 : i32
    %c0_i32_0 = arith.constant 0 : i32
    return %arg0, %c0_i32 : i32, i32
  }
  func.func @transform_3(%arg0: i32) -> (i32, i32) {
    %c0_i32 = arith.constant 0 : i32
    %c0_i32_0 = arith.constant 0 : i32
    return %arg0, %c0_i32 : i32, i32
  }
  func.func @transform_4(%arg0: i32) -> i32 {
    %c0_i32 = arith.constant 0 : i32
    %c0_i32_0 = arith.constant 0 : i32
    return %c0_i32 : i32
  }
}

</mosaic_0001>

<llo_original>
// kernel: tpu_custom_call.1
$region0: #{tpu_custom_call.1}
  #allocation0 [shape = 'u32[]', space=smem, size = 0x4, offset = 0x4, fixed_abs, tag = 'smem constant byte address 0x4 - core index']
  #allocation1 [shape = 'u32[72,128]{1,0:T(1,128)}', space=vmem, size = 0x9000, scoped, tag = 'internal scratch']
  #allocation2 [shape = 'f32[8,256]{1,0:T(8,128)}', space=vmem, size = 0x2000, scoped, tag = 'scratch operand']
  %s0 = inlined_call_operand.hbm [shape: f32[5,256], index: 0, kind: input, shape index: {}]
  %s1 = inlined_call_operand.hbm [shape: f32[5,256], index: 1, kind: input, shape index: {}]
  %s2 = inlined_call_operand.hbm [shape: f32[5,256], index: 2, kind: input, shape index: {}]
  %s3 = inlined_call_operand.hbm [shape: f32[5,256], index: 3, kind: input, shape index: {}]
  %s4 = inlined_call_operand.hbm [shape: f32[1], index: 4, kind: output, shape index: {}]
  %s5 = sld [smem:[#allocation0]]
  $region50: #{tpu_custom_call.1} parent=0
    _
  %s7 = ssub.s32 1, %s5
  %s8 = scalar_select 0, %s7, %s5
  $region1: #{tpu_custom_call.1} parent=0
    #allocation3 [shape = 'u8[8192]{0}', space=vmem, size = 0x2000, scoped, tag = 'input window, operand 0, single buffered']
    #allocation4 [shape = 's32[1]{0}', space=sflag, size = 0x4, scoped, tag = 'scoped memory for tpu_custom_call.1']
    #allocation5 [shape = 's32[1]{0}', space=sflag, size = 0x4, scoped, tag = 'scoped memory for tpu_custom_call.1']
    #allocation6 [shape = 'u8[8192]{0}', space=vmem, size = 0x2000, scoped, tag = 'input window, operand 1, single buffered']
    #allocation7 [shape = 's32[1]{0}', space=sflag, size = 0x4, scoped, tag = 'scoped memory for tpu_custom_call.1']
    #allocation8 [shape = 'u8[8192]{0}', space=vmem, size = 0x2000, scoped, tag = 'input window, operand 2, single buffered']
    #allocation9 [shape = 'u8[8192]{0}', space=vmem, size = 0x2000, scoped, tag = 'input window, operand 3, single buffered']
    #allocation10 [shape = 's32[1]{0}', space=sflag, size = 0x4, scoped, tag = 'scoped memory for tpu_custom_call.1']
    #allocation11 [shape = 'u8[512]{0}', space=smem, size = 0x200, scoped, tag = 'output window, operand 0, single buffered']
    %9 = vsyncpa [#allocation4], 0
    %10 = vsyncpa [#allocation7], 0
    %11 = vsyncpa [#allocation10], 0
    %12 = vsyncpa [#allocation5], 0
    // Predicated region
    $region2: #{tpu_custom_call.1} parent=1 // pred_check
      _
    $region3: #{tpu_custom_call.1} parent=1 // pred_check_branch
      %14 = sbr.rel (0) target = $region5
    $region4: #{tpu_custom_call.1} parent=1 // pred_region
      %16 = vsyncadd [#allocation4], 0
      %s18 = sshll.u32 %s0, 4
      %s19 = int_to_ptr.hbm [resolvable:$true] %s18
      %s20 = sshll.u32 [#allocation3], 4
      %s21 = int_to_ptr.vmem [resolvable:$true] %s20
      %23 = dma.hbm_to_vmem [thread:$0]  %s19, 256, %s21, [#allocation4]
    $region5: #{tpu_custom_call.1} parent=1 // pred_fallthru
      _
    // Predicated region
    $region6: #{tpu_custom_call.1} parent=1 // pred_check
      _
    $region7: #{tpu_custom_call.1} parent=1 // pred_check_branch
      %25 = sbr.rel (0) target = $region9
    $region8: #{tpu_custom_call.1} parent=1 // pred_region
      %27 = vsyncadd [#allocation7], 0
      %s29 = sshll.u32 %s1, 4
      %s30 = int_to_ptr.hbm [resolvable:$true] %s29
      %s31 = sshll.u32 [#allocation6], 4
      %s32 = int_to_ptr.vmem [resolvable:$true] %s31
      %34 = dma.hbm_to_vmem [thread:$0]  %s30, 256, %s32, [#allocation7]
    $region9: #{tpu_custom_call.1} parent=1 // pred_fallthru
      _
    // Predicated region
    $region10: #{tpu_custom_call.1} parent=1 // pred_check
      _
    $region11: #{tpu_custom_call.1} parent=1 // pred_check_branch
      %36 = sbr.rel (0) target = $region13
    $region12: #{tpu_custom_call.1} parent=1 // pred_region
      %38 = vsyncadd [#allocation7], 0
      %s40 = sshll.u32 %s2, 4
      %s41 = int_to_ptr.hbm [resolvable:$true] %s40
      %s42 = sshll.u32 [#allocation8], 4
      %s43 = int_to_ptr.vmem [resolvable:$true] %s42
      %45 = dma.hbm_to_vmem [thread:$0]  %s41, 256, %s43, [#allocation7]
    $region13: #{tpu_custom_call.1} parent=1 // pred_fallthru
      _
    // Predicated region
    $region14: #{tpu_custom_call.1} parent=1 // pred_check
      _
    $region15: #{tpu_custom_call.1} parent=1 // pred_check_branch
      %47 = sbr.rel (0) target = $region17
    $region16: #{tpu_custom_call.1} parent=1 // pred_region
      %49 = vsyncadd [#allocation10], 0
      %s51 = sshll.u32 %s3, 4
      %s52 = int_to_ptr.hbm [resolvable:$true] %s51
      %s53 = sshll.u32 [#allocation9], 4
      %s54 = int_to_ptr.vmem [resolvable:$true] %s53
      %56 = dma.hbm_to_vmem [thread:$0]  %s52, 256, %s54, [#allocation10]
    $region17: #{tpu_custom_call.1} parent=1 // pred_fallthru
      _
    // Predicated region
    $region18: #{tpu_custom_call.1} parent=1 // pred_check
      _
    $region19: #{tpu_custom_call.1} parent=1 // pred_check_branch
      %58 = sbr.rel (0) target = $region21
    $region20: #{tpu_custom_call.1} parent=1 // pred_region
      %60 = dma.done [#allocation4], 256
    $region21: #{tpu_custom_call.1} parent=1 // pred_fallthru
      _
    // Predicated region
    $region22: #{tpu_custom_call.1} parent=1 // pred_check
      _
    $region23: #{tpu_custom_call.1} parent=1 // pred_check_branch
      %62 = sbr.rel (0) target = $region25
    $region24: #{tpu_custom_call.1} parent=1 // pred_region
      %64 = dma.done [#allocation7], 256
    $region25: #{tpu_custom_call.1} parent=1 // pred_fallthru
      _
    // Predicated region
    $region26: #{tpu_custom_call.1} parent=1 // pred_check
      _
    $region27: #{tpu_custom_call.1} parent=1 // pred_check_branch
      %66 = sbr.rel (0) target = $region29
    $region28: #{tpu_custom_call.1} parent=1 // pred_region
      %68 = dma.done [#allocation7], 256
    $region29: #{tpu_custom_call.1} parent=1 // pred_fallthru
      _
    // Predicated region
    $region30: #{tpu_custom_call.1} parent=1 // pred_check
      _
    $region31: #{tpu_custom_call.1} parent=1 // pred_check_branch
      %70 = sbr.rel (0) target = $region33
    $region32: #{tpu_custom_call.1} parent=1 // pred_region
      %72 = dma.done [#allocation10], 256
    $region33: #{tpu_custom_call.1} parent=1 // pred_fallthru
      _
    %p73 = scmp.eq.s32.totalorder 0, 0
    // Predicated region
    $region34: #{tpu_custom_call.1} parent=1 // pred_check
      %p74 = pneg %p73
    $region35: #{tpu_custom_call.1} parent=1 // pred_check_branch
      %76 = sbr.rel (%p74) target = $region37
    $region36: #{tpu_custom_call.1} parent=1 // pred_region
      %77 = vst [vmem:[#allocation2] sm:$0xff] 0.0
      %78 = vst [vmem:[#allocation2 + $0x8] sm:$0xff] 0.0
    $region37: #{tpu_custom_call.1} parent=1 // pred_fallthru
      _
    %v79 = vld [vmem:[#allocation3] sm:$0x1f]
    %v80 = vld [vmem:[#allocation3 + $0x8] sm:$0x1f]
    %v81 = vld [vmem:[#allocation6] sm:$0x1f]
    %v82 = vld [vmem:[#allocation6 + $0x8] sm:$0x1f]
    %v83 = vld [vmem:[#allocation8] sm:$0x1f]
    %v84 = vld [vmem:[#allocation8 + $0x8] sm:$0x1f]
    %v85 = vld [vmem:[#allocation9] sm:$0x1f]
    %v86 = vld [vmem:[#allocation9 + $0x8] sm:$0x1f]
    %v87 = vsub.f32 %v83, %v79
    %v88 = vsub.f32 %v84, %v80
    %v89 = vsub.f32 %v85, %v81
    %v90 = vsub.f32 %v86, %v82
    %v91 = vsub.f32 %v83, %v81
    %v92 = vsub.f32 %v84, %v82
    %v93 = vsub.f32 %v85, %v79
    %v94 = vsub.f32 %v86, %v80
    %v95 = vand.u32 2147483647, %v87
    %v96 = vand.u32 2147483647, %v88
    %v97 = vand.u32 2147483647, %v89
    %v98 = vand.u32 2147483647, %v90
    %v99 = vand.u32 2147483647, %v91
    %v100 = vand.u32 2147483647, %v92
    %v101 = vand.u32 2147483647, %v93
    %v102 = vand.u32 2147483647, %v94
    %v103 = vsub.f32 %v87, %v93
    %v104 = vsub.f32 %v88, %v94
    %v105 = vand.u32 2147483647, %v103
    %v106 = vand.u32 2147483647, %v104
    %v107 = vsub.f32 %v89, %v93
    %v108 = vsub.f32 %v90, %v94
    %v109 = vand.u32 2147483647, %v107
    %v110 = vand.u32 2147483647, %v108
    %v111 = vsub.f32 %v105, %v109
    %v112 = vsub.f32 %v106, %v110
    %v113 = vand.u32 2147483647, %v111
    %v114 = vand.u32 2147483647, %v112
    %v115 = vld [vmem:[#allocation2] ss:$8 sm:$0x3]
    %vm116 = vcmask 1044480
    %v117 = vsel %vm116, %v95, 0.0
    %v118 = vrot.slane %v117, 4
    %v119 = vadd.f32 %v117, %v118
    %v120 = vrot.slane %v119, 2
    %v121 = vadd.f32 %v119, %v120
    %v122 = vrot.slane %v121, 1
    %v123 = vadd.f32 %v121, %v122
    %v124 = vsel %vm116, %v96, 0.0
    %v125 = vrot.slane %v124, 4
    %v126 = vadd.f32 %v124, %v125
    %v127 = vrot.slane %v126, 2
    %v128 = vadd.f32 %v126, %v127
    %v129 = vrot.slane %v128, 1
    %v130 = vadd.f32 %v128, %v129
    %v133 = vrot.slane %v130, 7
    %vm134 = vcmask 1040384
    %v135 = vsel %vm134, %v123, %v133
    %v137 = vadd.f32 %v115, %v135
    %v138 = vlaneseq
    %vm139 = vcmp.ge.s32.totalorder %v138, 0
    %vm140 = vcmp.lt.s32.totalorder %v138, 256
    %vm141 = vmand %vm139, %vm140
    %142 = vst.msk [vmem:[#allocation2] ss:$8 sm:$0x3] %vm141, %v137
    %143 = vst.msk [vmem:[#allocation2] ss:$8 sm:$0x0] %vm141, %v137
    %s144 = scalar_lea.vmem [#allocation2], 1
    %v145 = vld [vmem:[%s144] ss:$8 sm:$0x3]
    %v146 = vsel %vm116, %v97, 0.0
    %v147 = vrot.slane %v146, 4
    %v148 = vadd.f32 %v146, %v147
    %v149 = vrot.slane %v148, 2
    %v150 = vadd.f32 %v148, %v149
    %v151 = vrot.slane %v150, 1
    %v152 = vadd.f32 %v150, %v151
    %v153 = vsel %vm116, %v98, 0.0
    %v154 = vrot.slane %v153, 4
    %v155 = vadd.f32 %v153, %v154
    %v156 = vrot.slane %v155, 2
    %v157 = vadd.f32 %v155, %v156
    %v158 = vrot.slane %v157, 1
    %v159 = vadd.f32 %v157, %v158
    %v162 = vrot.slane %v159, 7
    %v163 = vsel %vm134, %v152, %v162
    %v165 = vadd.f32 %v145, %v163
    %166 = vst.msk [vmem:[%s144] ss:$8 sm:$0x3] %vm141, %v165
    %167 = vst.msk [vmem:[%s144] ss:$8 sm:$0x0] %vm141, %v165
    %s168 = scalar_lea.vmem [#allocation2], 2
    %v169 = vld [vmem:[%s168] ss:$8 sm:$0x3]
    %v170 = vsel %vm116, %v99, 0.0
    %v171 = vrot.slane %v170, 4
    %v172 = vadd.f32 %v170, %v171
    %v173 = vrot.slane %v172, 2
    %v174 = vadd.f32 %v172, %v173
    %v175 = vrot.slane %v174, 1
    %v176 = vadd.f32 %v174, %v175
    %v177 = vsel %vm116, %v100, 0.0
    %v178 = vrot.slane %v177, 4
    %v179 = vadd.f32 %v177, %v178
    %v180 = vrot.slane %v179, 2
    %v181 = vadd.f32 %v179, %v180
    %v182 = vrot.slane %v181, 1
    %v183 = vadd.f32 %v181, %v182
    %v186 = vrot.slane %v183, 7
    %v187 = vsel %vm134, %v176, %v186
    %v189 = vadd.f32 %v169, %v187
    %190 = vst.msk [vmem:[%s168] ss:$8 sm:$0x3] %vm141, %v189
    %191 = vst.msk [vmem:[%s168] ss:$8 sm:$0x0] %vm141, %v189
    %s192 = scalar_lea.vmem [#allocation2], 3
    %v193 = vld [vmem:[%s192] ss:$8 sm:$0x3]
    %v194 = vsel %vm116, %v101, 0.0
    %v195 = vrot.slane %v194, 4
    %v196 = vadd.f32 %v194, %v195
    %v197 = vrot.slane %v196, 2
    %v198 = vadd.f32 %v196, %v197
    %v199 = vrot.slane %v198, 1
    %v200 = vadd.f32 %v198, %v199
    %v201 = vsel %vm116, %v102, 0.0
    %v202 = vrot.slane %v201, 4
    %v203 = vadd.f32 %v201, %v202
    %v204 = vrot.slane %v203, 2
    %v205 = vadd.f32 %v203, %v204
    %v206 = vrot.slane %v205, 1
    %v207 = vadd.f32 %v205, %v206
    %v210 = vrot.slane %v207, 7
    %v211 = vsel %vm134, %v200, %v210
    %v213 = vadd.f32 %v193, %v211
    %214 = vst.msk [vmem:[%s192] ss:$8 sm:$0x3] %vm141, %v213
    %215 = vst.msk [vmem:[%s192] ss:$8 sm:$0x0] %vm141, %v213
    %s216 = scalar_lea.vmem [#allocation2], 4
    %v217 = vld [vmem:[%s216] ss:$8 sm:$0x3]
    %v218 = vsel %vm116, %v113, 0.0
    %v219 = vrot.slane %v218, 4
    %v220 = vadd.f32 %v218, %v219
    %v221 = vrot.slane %v220, 2
    %v222 = vadd.f32 %v220, %v221
    %v223 = vrot.slane %v222, 1
    %v224 = vadd.f32 %v222, %v223
    %v225 = vsel %vm116, %v114, 0.0
    %v226 = vrot.slane %v225, 4
    %v227 = vadd.f32 %v225, %v226
    %v228 = vrot.slane %v227, 2
    %v229 = vadd.f32 %v227, %v228
    %v230 = vrot.slane %v229, 1
    %v231 = vadd.f32 %v229, %v230
    %v234 = vrot.slane %v231, 7
    %v235 = vsel %vm134, %v224, %v234
    %v237 = vadd.f32 %v217, %v235
    %238 = vst.msk [vmem:[%s216] ss:$8 sm:$0x3] %vm141, %v237
    %239 = vst.msk [vmem:[%s216] ss:$8 sm:$0x0] %vm141, %v237
    // Predicated region
    $region38: #{tpu_custom_call.1} parent=1 // pred_check
      %p240 = pneg %p73
    $region39: #{tpu_custom_call.1} parent=1 // pred_check_branch
      %242 = sbr.rel (%p240) target = $region41
    $region40: #{tpu_custom_call.1} parent=1 // pred_region
      %v243 = vld [vmem:[#allocation2] ss:$8 sm:$0x3]
      %v245 = vperm.slane %v243, 0
      %v246 = vperm.slane %v243, 1
      %v249 = vsel %vm134, %v245, 0.0
      %v250 = vsel %vm134, %v246, 0.0
      %v251 = vadd.f32 %v249, %v250
      %252 = vadd.xlane.f32.xlu0 %v251
      %v253 = vpop.xlane.xlu0 %252
      %v254 = vrot.slane %v253, 4
      %v255 = vadd.f32 %v253, %v254
      %v256 = vrot.slane %v255, 2
      %v257 = vadd.f32 %v255, %v256
      %v258 = vrot.slane %v257, 1
      %v259 = vadd.f32 %v257, %v258
      %s260 = vtos %v259
      %s261 = smul.f32 %s260, 0.00078125
      %v262 = vld [vmem:[%s144] ss:$8 sm:$0x3]
      %v264 = vperm.slane %v262, 0
      %v265 = vperm.slane %v262, 1
      %v268 = vsel %vm134, %v264, 0.0
      %v269 = vsel %vm134, %v265, 0.0
      %v270 = vadd.f32 %v268, %v269
      %271 = vadd.xlane.f32.xlu0 %v270
      %v272 = vpop.xlane.xlu0 %271
      %v273 = vrot.slane %v272, 4
      %v274 = vadd.f32 %v272, %v273
      %v275 = vrot.slane %v274, 2
      %v276 = vadd.f32 %v274, %v275
      %v277 = vrot.slane %v276, 1
      %v278 = vadd.f32 %v276, %v277
      %s279 = vtos %v278
      %s280 = smul.f32 %s279, 0.00078125
      %v281 = vld [vmem:[%s168] ss:$8 sm:$0x3]
      %v283 = vperm.slane %v281, 0
      %v284 = vperm.slane %v281, 1
      %v287 = vsel %vm134, %v283, 0.0
      %v288 = vsel %vm134, %v284, 0.0
      %v289 = vadd.f32 %v287, %v288
      %290 = vadd.xlane.f32.xlu0 %v289
      %v291 = vpop.xlane.xlu0 %290
      %v292 = vrot.slane %v291, 4
      %v293 = vadd.f32 %v291, %v292
      %v294 = vrot.slane %v293, 2
      %v295 = vadd.f32 %v293, %v294
      %v296 = vrot.slane %v295, 1
      %v297 = vadd.f32 %v295, %v296
      %s298 = vtos %v297
      %s299 = smul.f32 %s298, 0.00078125
      %v300 = vld [vmem:[%s192] ss:$8 sm:$0x3]
      %v302 = vperm.slane %v300, 0
      %v303 = vperm.slane %v300, 1
      %v306 = vsel %vm134, %v302, 0.0
      %v307 = vsel %vm134, %v303, 0.0
      %v308 = vadd.f32 %v306, %v307
      %309 = vadd.xlane.f32.xlu0 %v308
      %v310 = vpop.xlane.xlu0 %309
      %v311 = vrot.slane %v310, 4
      %v312 = vadd.f32 %v310, %v311
      %v313 = vrot.slane %v312, 2
      %v314 = vadd.f32 %v312, %v313
      %v315 = vrot.slane %v314, 1
      %v316 = vadd.f32 %v314, %v315
      %s317 = vtos %v316
      %s318 = smul.f32 %s317, 0.00078125
      %v319 = vld [vmem:[%s216] ss:$8 sm:$0x3]
      %v321 = vperm.slane %v319, 0
      %v322 = vperm.slane %v319, 1
      %v325 = vsel %vm134, %v321, 0.0
      %v326 = vsel %vm134, %v322, 0.0
      %v327 = vadd.f32 %v325, %v326
      %328 = vadd.xlane.f32.xlu0 %v327
      %v329 = vpop.xlane.xlu0 %328
      %v330 = vrot.slane %v329, 4
      %v331 = vadd.f32 %v329, %v330
      %v332 = vrot.slane %v331, 2
      %v333 = vadd.f32 %v331, %v332
      %v334 = vrot.slane %v333, 1
      %v335 = vadd.f32 %v333, %v334
      %s336 = vtos %v335
      %s337 = smul.f32 %s336, 0.00078125
      %s338 = sadd.f32 %s261, %s280
      %s339 = sadd.f32 %s299, %s318
      %s340 = smin.f32 %s261, %s280
      %s341 = smin.f32 %s299, %s318
      %p342 = scmp.le.f32.partialorder %s340, %s341
      %s343 = scalar_select %p342, %s338, %s339
      %s344 = smul.f32 %s337, 0.1
      %s345 = sadd.f32 %s343, %s344
      %s346 = scalar_lea.smem [#allocation11], 0
      %347 = sst [smem:[%s346]] %s345
    $region41: #{tpu_custom_call.1} parent=1 // pred_fallthru
      _
    // Predicated region
    $region42: #{tpu_custom_call.1} parent=1 // pred_check
      _
    $region43: #{tpu_custom_call.1} parent=1 // pred_check_branch
      %349 = sbr.rel (0) target = $region45
    $region44: #{tpu_custom_call.1} parent=1 // pred_region
      %351 = vsyncadd [#allocation5], 0
      %s353 = sshll.u32 %s4, 4
      %s354 = int_to_ptr.hbm [resolvable:$true] %s353
      %356 = dma.smem_to_hbm [#allocation11], 16, %s354, [#allocation5]
    $region45: #{tpu_custom_call.1} parent=1 // pred_fallthru
      _
    // Predicated region
    $region46: #{tpu_custom_call.1} parent=1 // pred_check
      _
    $region47: #{tpu_custom_call.1} parent=1 // pred_check_branch
      %358 = sbr.rel (0) target = $region49
    $region48: #{tpu_custom_call.1} parent=1 // pred_region
      %360 = dma.done [#allocation5], 16
    $region49: #{tpu_custom_call.1} parent=1 // pred_fallthru
      _
    %361 = sfence
    %362 = vsyncpa [#allocation4], 1
    %363 = vsyncpa [#allocation7], 1
    %364 = vsyncpa [#allocation10], 1
    %365 = vsyncpa [#allocation5], 1

</llo_original>
